<compile_context>
chip_gen: v7x
topology: tpu7x:2x2x1
jax: 0.10.0
libtpu: 0.0.40
codegen_flags: <defaults>
</compile_context>

<pallas_src>
import functools

import jax
import jax.numpy as jnp
from jax.experimental import pallas as pl
from jax.experimental.pallas import tpu as pltpu


# ----------------------------- Pallas kernel ---------------------------------
def rgcn_fused_kernel(x_ref, a_ref, wcat_ref, bias_ref, out_ref, *, n_rel, dim):
    """Single-invocation fused RGCN layer.

    x_ref    : (N, D)          f32  node features
    a_ref    : (R, N, N)       bf16 per-relation row-normalized (mean) adjacency
    wcat_ref : (D, (R+1)*D)    bf16 [W_root | Wd_0 | ... | Wd_{R-1}]
    bias_ref : (1, D)          f32  bias
    out_ref  : (N, D)          f32  relu(output)
    """
    xb = x_ref[...].astype(jnp.bfloat16)

    # One lane-dense MXU pass: root transform + all R relation message transforms.
    # (N, D) @ (D, (R+1)*D) -> (N, (R+1)*D) f32 accumulation.
    h = jnp.dot(xb, wcat_ref[...], preferred_element_type=jnp.float32)

    # Root (self-loop) term + bias.
    acc = h[:, :dim] + bias_ref[...]

    # Mean aggregation per relation: statically unrolled, R small dots on the MXU.
    for r in range(n_rel):
        msg = h[:, (r + 1) * dim:(r + 2) * dim].astype(jnp.bfloat16)
        acc = acc + jnp.dot(a_ref[r], msg, preferred_element_type=jnp.float32)

    # ReLU activation; dropout is identity in eval mode.
    out_ref[...] = jnp.maximum(acc, 0.0).astype(out_ref.dtype)


def rgcn_layer_pallas(adj, x, w_blockdiag, root, bias):
    """adj: (R, N, N), x: (N, D), w_blockdiag: (R, D, D), root: (D, D), bias: (D,)."""
    R, N, _ = adj.shape
    D = x.shape[1]

    # Fused weight: [W_root | Wd_0 | ... | Wd_{R-1}]  -> (D, (R+1)*D), lane-dense.
    w_rel_cat = jnp.transpose(w_blockdiag, (1, 0, 2)).reshape(D, R * D)
    wcat = jnp.concatenate([root, w_rel_cat], axis=1)

    kernel = functools.partial(rgcn_fused_kernel, n_rel=R, dim=D)

    # Everything fits comfortably in VMEM; whole-array (gridless) pallas_call.
    return pl.pallas_call(
        kernel,
        out_shape=jax.ShapeDtypeStruct((N, D), jnp.float32),
    )(
        x.astype(jnp.float32),
        adj.astype(jnp.bfloat16),
        wcat.astype(jnp.bfloat16),
        bias.reshape(1, D).astype(jnp.float32),
    )


# ------------------------------- glue (JAX) -----------------------------------
def build_relation_adjacency(edge_index, edge_type, num_nodes, num_relations):
    """Dense per-relation row-normalized (mean) adjacency.

    flow='target_to_source': aggregation node i = edge_index[0], message source
    j = edge_index[1].
    """
    dst = edge_index[0]
    src = edge_index[1]
    counts = jnp.zeros((num_relations, num_nodes, num_nodes), jnp.float32)
    counts = counts.at[edge_type, dst, src].add(1.0)
    deg = counts.sum(axis=2, keepdims=True)
    return counts / jnp.maximum(deg, 1.0)


def block_diag_weights(w):
    """w: (R, B, D/B, D/B) -> dense block-diagonal (R, D, D)."""
    R, B, c, d = w.shape
    wd = jnp.zeros((R, B * c, B * d), w.dtype)
    for b in range(B):
        wd = wd.at[:, b * c:(b + 1) * c, b * d:(b + 1) * d].set(w[:, b])
    return wd


def rgcn_model_forward(params, graph, ent_user_ids, ent_item_ids, aspect_ent_ids):
    """Equivalent of RGCNModel.forward (eval mode)."""
    x = params["entity_nodes_features"]          # (N, D)
    N, D = x.shape
    R = params["rel_weight"].shape[0]

    adj = build_relation_adjacency(graph["edge_index"], graph["edge_type"], N, R)
    wd = block_diag_weights(params["rel_weight"])

    features = rgcn_layer_pallas(adj, x, wd, params["root"], params["bias"])

    ent_user_rep = features[ent_user_ids][:, None, :]    # (B, 1, D)
    ent_item_rep = features[ent_item_ids][:, None, :]    # (B, 1, D)
    ent_aspect_rep = features[aspect_ent_ids]             # (B, A, D)
    return ent_user_rep, ent_item_rep, ent_aspect_rep


# --------------------------------- main ---------------------------------------
if __name__ == "__main__":
    # Small synthetic config (mirrors opt.*):
    n_entity = 30          # -> N = n_entity + 2 = 32 nodes
    ent_node_dim = 32      # D
    n_relation = 3         # R  -> (R+1)*D = 128 fused lane width
    num_blocks = 4         # B  (D % B == 0)
    n_edges = 64
    batch = 2
    n_aspects = 3

    N = n_entity + 2
    D = ent_node_dim
    R = n_relation
    B = num_blocks

    key = jax.random.PRNGKey(0)
    k_feat, k_w, k_root, k_edge, k_type, k_ids = jax.random.split(key, 6)

    params = {
        # nn.init.uniform_(-0.1, 0.1)
        "entity_nodes_features": jax.random.uniform(
            k_feat, (N, D), jnp.float32, -0.1, 0.1),
        # RGCNConv block weights: (R, B, D/B, D/B), uniform_(-0.1, 0.1)
        "rel_weight": jax.random.uniform(
            k_w, (R, B, D // B, D // B), jnp.float32, -0.1, 0.1),
        # root weight (glorot in PyG; deterministic uniform here) and zero bias
        "root": jax.random.uniform(k_root, (D, D), jnp.float32, -0.1, 0.1),
        "bias": jnp.zeros((D,), jnp.float32),
    }

    # Synthetic knowledge graph edges (head, tail, relation).
    edge_nodes = jax.random.randint(k_edge, (2, n_edges), 0, N)
    edge_type = jax.random.randint(k_type, (n_edges,), 0, R)
    graph = {"edge_index": edge_nodes, "edge_type": edge_type}

    ids = jax.random.randint(k_ids, (batch * 2 + batch * n_aspects,), 0, N)
    ent_user_ids = ids[:batch]
    ent_item_ids = ids[batch:2 * batch]
    aspect_ent_ids = ids[2 * batch:].reshape(batch, n_aspects)

    fwd = jax.jit(functools.partial(rgcn_model_forward, params, graph))
    user_rep, item_rep, aspect_rep = fwd(ent_user_ids, ent_item_ids, aspect_ent_ids)
    jax.block_until_ready((user_rep, item_rep, aspect_rep))

    assert user_rep.shape == (batch, 1, D)
    assert item_rep.shape == (batch, 1, D)
    assert aspect_rep.shape == (batch, n_aspects, D)
    print("KERNEL_OK")
</pallas_src>

<mosaic_0001>
module attributes {stable_mosaic.version = 11 : i64} {
  func.func @rgcn_fused_kernel(%arg0: memref<32x32xf32, #tpu.memory_space<vmem>>, %arg1: memref<3x32x32xbf16, #tpu.memory_space<vmem>>, %arg2: memref<32x128xbf16, #tpu.memory_space<vmem>>, %arg3: memref<1x32xf32, #tpu.memory_space<vmem>>, %arg4: memref<32x32xf32, #tpu.memory_space<vmem>>) attributes {dimension_semantics = [], scalar_prefetch = 0 : i64, scratch_operands = 0 : i64, tpu.core_type = #tpu.core_type<tc>} {
    %c0 = arith.constant 0 : index
    %c0_0 = arith.constant 0 : index
    %0 = vector.load %arg0[%c0, %c0_0] : memref<32x32xf32, #tpu.memory_space<vmem>>, vector<32x32xf32>
    %1 = arith.truncf %0 : vector<32x32xf32> to vector<32x32xbf16>
    %c0_1 = arith.constant 0 : index
    %c0_2 = arith.constant 0 : index
    %2 = vector.load %arg2[%c0_1, %c0_2] : memref<32x128xbf16, #tpu.memory_space<vmem>>, vector<32x128xbf16>
    %cst = arith.constant dense<0.000000e+00> : vector<32x128xf32>
    %3 = tpu.matmul %1, %2, %cst {dimension_numbers = #tpu.dot_dimension_numbers<[1], [0], [0], [1], [0, 0, 1, 1], [], []>} : vector<32x32xbf16>, vector<32x128xbf16>, vector<32x128xf32> -> vector<32x128xf32>
    %4 = vector.extract_strided_slice %3 {offsets = [0, 0], sizes = [32, 32], strides = [1, 1]} : vector<32x128xf32> to vector<32x32xf32>
    %c0_3 = arith.constant 0 : index
    %c0_4 = arith.constant 0 : index
    %5 = vector.load %arg3[%c0_3, %c0_4] : memref<1x32xf32, #tpu.memory_space<vmem>>, vector<1x32xf32>
    %6 = vector.broadcast %5 : vector<1x32xf32> to vector<32x32xf32>
    %7 = arith.addf %4, %6 : vector<32x32xf32>
    %8 = vector.extract_strided_slice %3 {offsets = [0, 32], sizes = [32, 32], strides = [1, 1]} : vector<32x128xf32> to vector<32x32xf32>
    %9 = arith.truncf %8 : vector<32x32xf32> to vector<32x32xbf16>
    %c0_5 = arith.constant 0 : index
    %c0_6 = arith.constant 0 : index
    %c0_7 = arith.constant 0 : index
    %10 = vector.load %arg1[%c0_5, %c0_6, %c0_7] : memref<3x32x32xbf16, #tpu.memory_space<vmem>>, vector<1x32x32xbf16>
    %11 = vector.shape_cast %10 : vector<1x32x32xbf16> to vector<32x32xbf16>
    %cst_8 = arith.constant dense<0.000000e+00> : vector<32x32xf32>
    %12 = tpu.matmul %11, %9, %cst_8 {dimension_numbers = #tpu.dot_dimension_numbers<[1], [0], [0], [1], [0, 0, 1, 1], [], []>} : vector<32x32xbf16>, vector<32x32xbf16>, vector<32x32xf32> -> vector<32x32xf32>
    %13 = arith.addf %7, %12 : vector<32x32xf32>
    %14 = vector.extract_strided_slice %3 {offsets = [0, 64], sizes = [32, 32], strides = [1, 1]} : vector<32x128xf32> to vector<32x32xf32>
    %15 = arith.truncf %14 : vector<32x32xf32> to vector<32x32xbf16>
    %c1 = arith.constant 1 : index
    %c0_9 = arith.constant 0 : index
    %c0_10 = arith.constant 0 : index
    %16 = vector.load %arg1[%c1, %c0_9, %c0_10] : memref<3x32x32xbf16, #tpu.memory_space<vmem>>, vector<1x32x32xbf16>
    %17 = vector.shape_cast %16 : vector<1x32x32xbf16> to vector<32x32xbf16>
    %cst_11 = arith.constant dense<0.000000e+00> : vector<32x32xf32>
    %18 = tpu.matmul %17, %15, %cst_11 {dimension_numbers = #tpu.dot_dimension_numbers<[1], [0], [0], [1], [0, 0, 1, 1], [], []>} : vector<32x32xbf16>, vector<32x32xbf16>, vector<32x32xf32> -> vector<32x32xf32>
    %19 = arith.addf %13, %18 : vector<32x32xf32>
    %20 = vector.extract_strided_slice %3 {offsets = [0, 96], sizes = [32, 32], strides = [1, 1]} : vector<32x128xf32> to vector<32x32xf32>
    %21 = arith.truncf %20 : vector<32x32xf32> to vector<32x32xbf16>
    %c2 = arith.constant 2 : index
    %c0_12 = arith.constant 0 : index
    %c0_13 = arith.constant 0 : index
    %22 = vector.load %arg1[%c2, %c0_12, %c0_13] : memref<3x32x32xbf16, #tpu.memory_space<vmem>>, vector<1x32x32xbf16>
    %23 = vector.shape_cast %22 : vector<1x32x32xbf16> to vector<32x32xbf16>
    %cst_14 = arith.constant dense<0.000000e+00> : vector<32x32xf32>
    %24 = tpu.matmul %23, %21, %cst_14 {dimension_numbers = #tpu.dot_dimension_numbers<[1], [0], [0], [1], [0, 0, 1, 1], [], []>} : vector<32x32xbf16>, vector<32x32xbf16>, vector<32x32xf32> -> vector<32x32xf32>
    %25 = arith.addf %19, %24 : vector<32x32xf32>
    %cst_15 = arith.constant 0.000000e+00 : f32
    %26 = vector.broadcast %cst_15 : f32 to vector<32x32xf32>
    %27 = arith.maximumf %25, %26 : vector<32x32xf32>
    %c0_16 = arith.constant 0 : index
    %c0_17 = arith.constant 0 : index
    %28 = vector.load %arg4[%c0_16, %c0_17] : memref<32x32xf32, #tpu.memory_space<vmem>>, vector<32x32xf32>
    tpu.vector_store %arg4[%c0_16, %c0_17], %27 {strides = array<i32>} : memref<32x32xf32, #tpu.memory_space<vmem>>, vector<32x32xf32>,
    return
  }
}

</mosaic_0001>

<llo_original>
// kernel: rgcn_model_forward.1
$region0: #{rgcn_model_forward.1}
  #allocation0 [shape = 'u32[]', space=smem, size = 0x4, offset = 0x4, fixed_abs, tag = 'smem constant byte address 0x4 - core index']
  #allocation1 [shape = 'u32[144,128]{1,0:T(1,128)}', space=vmem, size = 0x12000, scoped, tag = 'internal scratch']
  %s0 = inlined_call_operand.hbm [shape: f32[32,32], index: 0, kind: input, shape index: {}]
  %s1 = inlined_call_operand.hbm [shape: bf16[3,32,32], index: 1, kind: input, shape index: {}]
  %s2 = inlined_call_operand.vmem [shape: bf16[32,128], index: 2, kind: input, shape index: {}]
  %s3 = inlined_call_operand.vmem [shape: f32[1,32], index: 3, kind: input, shape index: {}]
  %s4 = inlined_call_operand.vmem [shape: f32[32,32], index: 4, kind: output, shape index: {}]
  %s5 = sld [smem:[#allocation0]]
  $region34: #{rgcn_model_forward.1} parent=0
    _
  %s7 = ssub.s32 1, %s5
  %s8 = scalar_select 0, %s7, %s5
  $region1: #{rgcn_model_forward.1} parent=0
    #allocation2 [shape = 'u8[16384]{0}', space=vmem, size = 0x4000, scoped, tag = 'input window, operand 0, single buffered']
    #allocation3 [shape = 's32[1]{0}', space=sflag, size = 0x4, scoped, tag = 'scoped memory for rgcn_model_forward.1']
    #allocation4 [shape = 'u8[24576]{0}', space=vmem, size = 0x6000, scoped, tag = 'input window, operand 1, single buffered']
    #allocation5 [shape = 's32[1]{0}', space=sflag, size = 0x4, scoped, tag = 'scoped memory for rgcn_model_forward.1']
    %9 = vsyncpa [#allocation3], 0
    %10 = vsyncpa [#allocation5], 0
    // Predicated region
    $region2: #{rgcn_model_forward.1} parent=1 // pred_check
      _
    $region3: #{rgcn_model_forward.1} parent=1 // pred_check_branch
      %12 = sbr.rel (0) target = $region5
    $region4: #{rgcn_model_forward.1} parent=1 // pred_region
      %s14 = ssub.s32 512, 512
      %15 = vsyncadd [#allocation3], %s14
      %s16 = sshll.u32 [#allocation2], 4
      %s17 = int_to_ptr.vmem [resolvable:$true] %s16
      %22 = dma.hbm_to_vmem [thread:$0]  %s0, 512, %s17, [#allocation3], 128, 128, 8
    $region5: #{rgcn_model_forward.1} parent=1 // pred_fallthru
      _
    // Predicated region
    $region6: #{rgcn_model_forward.1} parent=1 // pred_check
      _
    $region7: #{rgcn_model_forward.1} parent=1 // pred_check_branch
      %24 = sbr.rel (0) target = $region9
    $region8: #{rgcn_model_forward.1} parent=1 // pred_region
      %s26 = ssub.s32 768, 768
      %27 = vsyncadd [#allocation5], %s26
      %s28 = sshll.u32 [#allocation4], 4
      %s29 = int_to_ptr.vmem [resolvable:$true] %s28
      %34 = dma.hbm_to_vmem [thread:$0]  %s1, 768, %s29, [#allocation5], 64, 64, 4
    $region9: #{rgcn_model_forward.1} parent=1 // pred_fallthru
      _
    // Predicated region
    $region10: #{rgcn_model_forward.1} parent=1 // pred_check
      _
    $region11: #{rgcn_model_forward.1} parent=1 // pred_check_branch
      %36 = sbr.rel (0) target = $region13
    $region12: #{rgcn_model_forward.1} parent=1 // pred_region
      _
    $region13: #{rgcn_model_forward.1} parent=1 // pred_fallthru
      _
    // Predicated region
    $region14: #{rgcn_model_forward.1} parent=1 // pred_check
      _
    $region15: #{rgcn_model_forward.1} parent=1 // pred_check_branch
      %38 = sbr.rel (0) target = $region17
    $region16: #{rgcn_model_forward.1} parent=1 // pred_region
      _
    $region17: #{rgcn_model_forward.1} parent=1 // pred_fallthru
      _
    // Predicated region
    $region18: #{rgcn_model_forward.1} parent=1 // pred_check
      _
    $region19: #{rgcn_model_forward.1} parent=1 // pred_check_branch
      %40 = sbr.rel (0) target = $region21
    $region20: #{rgcn_model_forward.1} parent=1 // pred_region
      %41 = dma.done [#allocation3], 512
    $region21: #{rgcn_model_forward.1} parent=1 // pred_fallthru
      _
    // Predicated region
    $region22: #{rgcn_model_forward.1} parent=1 // pred_check
      _
    $region23: #{rgcn_model_forward.1} parent=1 // pred_check_branch
      %43 = sbr.rel (0) target = $region25
    $region24: #{rgcn_model_forward.1} parent=1 // pred_region
      %44 = dma.done [#allocation5], 768
    $region25: #{rgcn_model_forward.1} parent=1 // pred_fallthru
      _
    %v46 = vld [vmem:[#allocation2] sm:$0xff]
    %v47 = vld [vmem:[#allocation2 + $0x8] sm:$0xff]
    %v48 = vld [vmem:[#allocation2 + $0x10] sm:$0xff]
    %v49 = vld [vmem:[#allocation2 + $0x18] sm:$0xff]
    %v50 = vpack.c.bf16 %v47, %v46
    %v51 = vpack.c.bf16 %v49, %v48
    %v52 = vld [vmem:[%s2] sm:$0xf]
    %v53 = vld [vmem:[%s2 + $0x4] sm:$0xf]
    %v54 = vld [vmem:[%s2 + $0x8] sm:$0xf]
    %v55 = vld [vmem:[%s2 + $0xc] sm:$0xf]
    %v60 = vunpack.c.l.b16 %v52
    %v61 = vunpack.c.l.b16 %v53
    %v62 = vunpack.c.l.b16 %v54
    %v63 = vunpack.c.l.b16 %v55
    %v64 = vpack.c.b16 %v61, %v60
    %v65 = vpack.c.b16 %v63, %v62
    %vm68 = vcmask 261120
    %v70 = vsel %vm68, %v50, 0
    %v73 = vsel %vm68, %v51, 0
    %75 = vmatprep.subr.bf16.mxu0 0
    %76 = vmatpush1.bf16.msra.mxu0 %v64
    %77 = vmatprep.subr.bf16.mxu0 0
    %78 = vmatpush1.bf16.msra.mxu0 %v65
    %79 = vmatprep.subr.bf16.mxu0 0
    %80 = vmatpush1.bf16.msra.mxu0 0
    %81 = vmatprep.subr.bf16.mxu0 0
    %82 = vmatpush1.bf16.msra.mxu0 0
    %83 = vmatprep.subr.bf16.mxu0 0
    %84 = vmatpush1.bf16.msra.mxu0 0
    %85 = vmatprep.subr.bf16.mxu0 0
    %86 = vmatpush1.bf16.msra.mxu0 0
    %87 = vmatprep.subr.bf16.mxu0 0
    %88 = vmatpush1.bf16.msra.mxu0 0
    %89 = vmatprep.subr.bf16.mxu0 0
    %90 = vmatpush1.bf16.msra.mxu0 0
    %91 = vmatprep.subr.bf16.mxu0 0
    %92 = vmatpush1.bf16.msra.mxu0 0
    %93 = vmatprep.subr.bf16.mxu0 0
    %94 = vmatpush1.bf16.msra.mxu0 0
    %95 = vmatprep.subr.bf16.mxu0 0
    %96 = vmatpush1.bf16.msra.mxu0 0
    %97 = vmatprep.subr.bf16.mxu0 0
    %98 = vmatpush1.bf16.msra.mxu0 0
    %99 = vmatprep.subr.bf16.mxu0 0
    %100 = vmatpush1.bf16.msra.mxu0 0
    %101 = vmatprep.subr.bf16.mxu0 0
    %102 = vmatpush1.bf16.msra.mxu0 0
    %103 = vmatprep.subr.bf16.mxu0 0
    %104 = vmatpush1.bf16.msra.mxu0 0
    %105 = vmatprep.subr.bf16.mxu0 0
    %106 = vmatpush1.bf16.msra.mxu0 0
    %107 = vmatprep.mubr.bf16.mxu0 0
    %108 = vmatmul.mubr.bf16.gmra.mrb[0].mxu0 %v70
    %v109 = vpop.f32.mrb[0].mxu0
    %v110 = vadd.f32 0.0, %v109
    %v111 = vpop.f32.mrb[0].mxu0
    %v112 = vpop.f32.mrb[0].mxu0
    %v113 = vadd.f32 0.0, %v112
    %v114 = vpop.f32.mrb[0].mxu0
    %115 = vmatprep.mubr.bf16.mxu0 0
    %116 = vmatmul.mubr.bf16.gmra.mrb[0].mxu0 %v73
    %v117 = vpop.f32.mrb[0].mxu0
    %v118 = vadd.f32 0.0, %v117
    %v119 = vpop.f32.mrb[0].mxu0
    %v120 = vpop.f32.mrb[0].mxu0
    %v121 = vadd.f32 0.0, %v120
    %v122 = vpop.f32.mrb[0].mxu0
    %123 = vdwg.mxu0
    %v124 = vld [vmem:[%s3] sm:$0x1]
    %v126 = vlaneseq
    %v127 = vshrl.u32 %v126, 7
    %v128 = vsub.s32 0, %v127
    %v129 = vrot.slane %v124, %v128
    %v131 = vadd.f32 %v110, %v129
    %v132 = vadd.f32 %v113, %v129
    %v133 = vadd.f32 %v118, %v129
    %v134 = vadd.f32 %v121, %v129
    %v135 = vpack.c.bf16 %v113, %v110
    %v136 = vpack.c.bf16 %v121, %v118
    %v137 = vld [vmem:[#allocation4] sm:$0xf]
    %v138 = vld [vmem:[#allocation4 + $0x4] sm:$0xf]
    %v139 = vld [vmem:[#allocation4 + $0x8] sm:$0xf]
    %v140 = vld [vmem:[#allocation4 + $0xc] sm:$0xf]
    %v145 = vunpack.c.l.b16 %v137
    %v146 = vunpack.c.l.b16 %v138
    %v147 = vunpack.c.l.b16 %v139
    %v148 = vunpack.c.l.b16 %v140
    %v149 = vpack.c.b16 %v146, %v145
    %v150 = vpack.c.b16 %v148, %v147
    %153 = vrot.lane.b32.xlu0 %v135, 96
    %v154 = vpop.permute.xlu0 %153
    %155 = vrot.lane.b32.xlu0 %v136, 96
    %v156 = vpop.permute.xlu0 %155
    %v160 = vsel %vm68, %v149, 0
    %v163 = vsel %vm68, %v150, 0
    %165 = vmatprep.subr.bf16.mxu0 0
    %166 = vmatpush1.bf16.msra.mxu0 %v154
    %167 = vmatprep.subr.bf16.mxu0 0
    %168 = vmatpush1.bf16.msra.mxu0 %v156
    %169 = vmatprep.subr.bf16.mxu0 0
    %170 = vmatpush1.bf16.msra.mxu0 0
    %171 = vmatprep.subr.bf16.mxu0 0
    %172 = vmatpush1.bf16.msra.mxu0 0
    %173 = vmatprep.subr.bf16.mxu0 0
    %174 = vmatpush1.bf16.msra.mxu0 0
    %175 = vmatprep.subr.bf16.mxu0 0
    %176 = vmatpush1.bf16.msra.mxu0 0
    %177 = vmatprep.subr.bf16.mxu0 0
    %178 = vmatpush1.bf16.msra.mxu0 0
    %179 = vmatprep.subr.bf16.mxu0 0
    %180 = vmatpush1.bf16.msra.mxu0 0
    %181 = vmatprep.subr.bf16.mxu0 0
    %182 = vmatpush1.bf16.msra.mxu0 0
    %183 = vmatprep.subr.bf16.mxu0 0
    %184 = vmatpush1.bf16.msra.mxu0 0
    %185 = vmatprep.subr.bf16.mxu0 0
    %186 = vmatpush1.bf16.msra.mxu0 0
    %187 = vmatprep.subr.bf16.mxu0 0
    %188 = vmatpush1.bf16.msra.mxu0 0
    %189 = vmatprep.subr.bf16.mxu0 0
    %190 = vmatpush1.bf16.msra.mxu0 0
    %191 = vmatprep.subr.bf16.mxu0 0
    %192 = vmatpush1.bf16.msra.mxu0 0
    %193 = vmatprep.subr.bf16.mxu0 0
    %194 = vmatpush1.bf16.msra.mxu0 0
    %195 = vmatprep.subr.bf16.mxu0 0
    %196 = vmatpush1.bf16.msra.mxu0 0
    %197 = vmatprep.mubr.bf16.mxu0 0
    %198 = vmatmul.mubr.bf16.gmra.mrb[0].mxu0 %v160
    %v199 = vpop.f32.mrb[0].mxu0
    %v200 = vadd.f32 0.0, %v199
    %v201 = vpop.f32.mrb[0].mxu0
    %v202 = vpop.f32.mrb[0].mxu0
    %v203 = vadd.f32 0.0, %v202
    %v204 = vpop.f32.mrb[0].mxu0
    %205 = vmatprep.mubr.bf16.mxu0 0
    %206 = vmatmul.mubr.bf16.gmra.mrb[0].mxu0 %v163
    %v207 = vpop.f32.mrb[0].mxu0
    %v208 = vadd.f32 0.0, %v207
    %v209 = vpop.f32.mrb[0].mxu0
    %v210 = vpop.f32.mrb[0].mxu0
    %v211 = vadd.f32 0.0, %v210
    %v212 = vpop.f32.mrb[0].mxu0
    %213 = vdwg.mxu0
    %v214 = vadd.f32 %v131, %v200
    %v215 = vadd.f32 %v132, %v203
    %v216 = vadd.f32 %v133, %v208
    %v217 = vadd.f32 %v134, %v211
    %s218 = scalar_lea.vmem [#allocation4], 16
    %v219 = vld [vmem:[%s218] sm:$0xf]
    %v220 = vld [vmem:[%s218 + $0x4] sm:$0xf]
    %v221 = vld [vmem:[%s218 + $0x8] sm:$0xf]
    %v222 = vld [vmem:[%s218 + $0xc] sm:$0xf]
    %v227 = vunpack.c.l.b16 %v219
    %v228 = vunpack.c.l.b16 %v220
    %v229 = vunpack.c.l.b16 %v221
    %v230 = vunpack.c.l.b16 %v222
    %v231 = vpack.c.b16 %v228, %v227
    %v232 = vpack.c.b16 %v230, %v229
    %233 = vrot.lane.b32.xlu0 %v135, 64
    %v234 = vpop.permute.xlu0 %233
    %235 = vrot.lane.b32.xlu0 %v136, 64
    %v236 = vpop.permute.xlu0 %235
    %v240 = vsel %vm68, %v231, 0
    %v243 = vsel %vm68, %v232, 0
    %245 = vmatprep.subr.bf16.mxu0 0
    %246 = vmatpush1.bf16.msra.mxu0 %v234
    %247 = vmatprep.subr.bf16.mxu0 0
    %248 = vmatpush1.bf16.msra.mxu0 %v236
    %249 = vmatprep.subr.bf16.mxu0 0
    %250 = vmatpush1.bf16.msra.mxu0 0
    %251 = vmatprep.subr.bf16.mxu0 0
    %252 = vmatpush1.bf16.msra.mxu0 0
    %253 = vmatprep.subr.bf16.mxu0 0
    %254 = vmatpush1.bf16.msra.mxu0 0
    %255 = vmatprep.subr.bf16.mxu0 0
    %256 = vmatpush1.bf16.msra.mxu0 0
    %257 = vmatprep.subr.bf16.mxu0 0
    %258 = vmatpush1.bf16.msra.mxu0 0
    %259 = vmatprep.subr.bf16.mxu0 0
    %260 = vmatpush1.bf16.msra.mxu0 0
    %261 = vmatprep.subr.bf16.mxu0 0
    %262 = vmatpush1.bf16.msra.mxu0 0
    %263 = vmatprep.subr.bf16.mxu0 0
    %264 = vmatpush1.bf16.msra.mxu0 0
    %265 = vmatprep.subr.bf16.mxu0 0
    %266 = vmatpush1.bf16.msra.mxu0 0
    %267 = vmatprep.subr.bf16.mxu0 0
    %268 = vmatpush1.bf16.msra.mxu0 0
    %269 = vmatprep.subr.bf16.mxu0 0
    %270 = vmatpush1.bf16.msra.mxu0 0
    %271 = vmatprep.subr.bf16.mxu0 0
    %272 = vmatpush1.bf16.msra.mxu0 0
    %273 = vmatprep.subr.bf16.mxu0 0
    %274 = vmatpush1.bf16.msra.mxu0 0
    %275 = vmatprep.subr.bf16.mxu0 0
    %276 = vmatpush1.bf16.msra.mxu0 0
    %277 = vmatprep.mubr.bf16.mxu0 0
    %278 = vmatmul.mubr.bf16.gmra.mrb[0].mxu0 %v240
    %v279 = vpop.f32.mrb[0].mxu0
    %v280 = vadd.f32 0.0, %v279
    %v281 = vpop.f32.mrb[0].mxu0
    %v282 = vpop.f32.mrb[0].mxu0
    %v283 = vadd.f32 0.0, %v282
    %v284 = vpop.f32.mrb[0].mxu0
    %285 = vmatprep.mubr.bf16.mxu0 0
    %286 = vmatmul.mubr.bf16.gmra.mrb[0].mxu0 %v243
    %v287 = vpop.f32.mrb[0].mxu0
    %v288 = vadd.f32 0.0, %v287
    %v289 = vpop.f32.mrb[0].mxu0
    %v290 = vpop.f32.mrb[0].mxu0
    %v291 = vadd.f32 0.0, %v290
    %v292 = vpop.f32.mrb[0].mxu0
    %293 = vdwg.mxu0
    %v294 = vadd.f32 %v214, %v280
    %v295 = vadd.f32 %v215, %v283
    %v296 = vadd.f32 %v216, %v288
    %v297 = vadd.f32 %v217, %v291
    %s298 = scalar_lea.vmem [#allocation4], 32
    %v299 = vld [vmem:[%s298] sm:$0xf]
    %v300 = vld [vmem:[%s298 + $0x4] sm:$0xf]
    %v301 = vld [vmem:[%s298 + $0x8] sm:$0xf]
    %v302 = vld [vmem:[%s298 + $0xc] sm:$0xf]
    %v307 = vunpack.c.l.b16 %v299
    %v308 = vunpack.c.l.b16 %v300
    %v309 = vunpack.c.l.b16 %v301
    %v310 = vunpack.c.l.b16 %v302
    %v311 = vpack.c.b16 %v308, %v307
    %v312 = vpack.c.b16 %v310, %v309
    %313 = vrot.lane.b32.xlu0 %v135, 32
    %v314 = vpop.permute.xlu0 %313
    %315 = vrot.lane.b32.xlu0 %v136, 32
    %v316 = vpop.permute.xlu0 %315
    %v320 = vsel %vm68, %v311, 0
    %v323 = vsel %vm68, %v312, 0
    %325 = vmatprep.subr.bf16.mxu0 0
    %326 = vmatpush1.bf16.msra.mxu0 %v314
    %327 = vmatprep.subr.bf16.mxu0 0
    %328 = vmatpush1.bf16.msra.mxu0 %v316
    %329 = vmatprep.subr.bf16.mxu0 0
    %330 = vmatpush1.bf16.msra.mxu0 0
    %331 = vmatprep.subr.bf16.mxu0 0
    %332 = vmatpush1.bf16.msra.mxu0 0
    %333 = vmatprep.subr.bf16.mxu0 0
    %334 = vmatpush1.bf16.msra.mxu0 0
    %335 = vmatprep.subr.bf16.mxu0 0
    %336 = vmatpush1.bf16.msra.mxu0 0
    %337 = vmatprep.subr.bf16.mxu0 0
    %338 = vmatpush1.bf16.msra.mxu0 0
    %339 = vmatprep.subr.bf16.mxu0 0
    %340 = vmatpush1.bf16.msra.mxu0 0
    %341 = vmatprep.subr.bf16.mxu0 0
    %342 = vmatpush1.bf16.msra.mxu0 0
    %343 = vmatprep.subr.bf16.mxu0 0
    %344 = vmatpush1.bf16.msra.mxu0 0
    %345 = vmatprep.subr.bf16.mxu0 0
    %346 = vmatpush1.bf16.msra.mxu0 0
    %347 = vmatprep.subr.bf16.mxu0 0
    %348 = vmatpush1.bf16.msra.mxu0 0
    %349 = vmatprep.subr.bf16.mxu0 0
    %350 = vmatpush1.bf16.msra.mxu0 0
    %351 = vmatprep.subr.bf16.mxu0 0
    %352 = vmatpush1.bf16.msra.mxu0 0
    %353 = vmatprep.subr.bf16.mxu0 0
    %354 = vmatpush1.bf16.msra.mxu0 0
    %355 = vmatprep.subr.bf16.mxu0 0
    %356 = vmatpush1.bf16.msra.mxu0 0
    %357 = vmatprep.mubr.bf16.mxu0 0
    %358 = vmatmul.mubr.bf16.gmra.mrb[0].mxu0 %v320
    %v359 = vpop.f32.mrb[0].mxu0
    %v360 = vadd.f32 0.0, %v359
    %v361 = vpop.f32.mrb[0].mxu0
    %v362 = vpop.f32.mrb[0].mxu0
    %v363 = vadd.f32 0.0, %v362
    %v364 = vpop.f32.mrb[0].mxu0
    %365 = vmatprep.mubr.bf16.mxu0 0
    %366 = vmatmul.mubr.bf16.gmra.mrb[0].mxu0 %v323
    %v367 = vpop.f32.mrb[0].mxu0
    %v368 = vadd.f32 0.0, %v367
    %v369 = vpop.f32.mrb[0].mxu0
    %v370 = vpop.f32.mrb[0].mxu0
    %v371 = vadd.f32 0.0, %v370
    %v372 = vpop.f32.mrb[0].mxu0
    %373 = vdwg.mxu0
    %v374 = vadd.f32 %v294, %v360
    %v375 = vadd.f32 %v295, %v363
    %v376 = vadd.f32 %v296, %v368
    %v377 = vadd.f32 %v297, %v371
    %v378 = vmax.f32 %v374, 0.0
    %v379 = vmax.f32 %v375, 0.0
    %v380 = vmax.f32 %v376, 0.0
    %v381 = vmax.f32 %v377, 0.0
    %382 = vst.msk [vmem:[%s4] sm:$0xff] %vm68, %v378
    %383 = vst.msk [vmem:[%s4 + $0x8] sm:$0xff] %vm68, %v379
    %384 = vst.msk [vmem:[%s4 + $0x10] sm:$0xff] %vm68, %v380
    %385 = vst.msk [vmem:[%s4 + $0x18] sm:$0xff] %vm68, %v381
    // Predicated region
    $region26: #{rgcn_model_forward.1} parent=1 // pred_check
      _
    $region27: #{rgcn_model_forward.1} parent=1 // pred_check_branch
      %387 = sbr.rel (0) target = $region29
    $region28: #{rgcn_model_forward.1} parent=1 // pred_region
      _
    $region29: #{rgcn_model_forward.1} parent=1 // pred_fallthru
      _
    // Predicated region
    $region30: #{rgcn_model_forward.1} parent=1 // pred_check
      _
    $region31: #{rgcn_model_forward.1} parent=1 // pred_check_branch
      %389 = sbr.rel (0) target = $region33
    $region32: #{rgcn_model_forward.1} parent=1 // pred_region
      _
    $region33: #{rgcn_model_forward.1} parent=1 // pred_fallthru
      _
    %390 = vsyncpa [#allocation3], 1
    %391 = vsyncpa [#allocation5], 1

</llo_original>
